<compile_context>
chip_gen: v6e
topology: v6e:2x2x1
jax: 0.10.0
libtpu: 0.0.40
codegen_flags: <defaults>
</compile_context>

<pallas_src>
import jax
import jax.numpy as jnp
from jax.experimental import pallas as pl
from jax.experimental.pallas import tpu as pltpu

_LANE = 128


def _gil_sigmoid_kernel(x_ref, o_ref):
    # GilSigmoid.forward == custom_sigmoid(input) == identity pass-through.
    # TODO(synk): if the *documented* custom sigmoid is ever enabled in the
    # PyTorch module, replace the line below with:
    #   e = jnp.exp(x_ref[...].astype(jnp.bfloat16).astype(jnp.float32))
    #   o_ref[...] = ((11.0 * e - 1.0)
    #                 * pl.reciprocal(10.0 * (e + 1.0), approx=True)
    #                ).astype(o_ref.dtype)
    # and re-check the roofline: at f32 the single EUP transcendental slot can
    # become the binding unit against v6e/v7x HBM feed rates, so prefer bf16
    # exp (EUP) and keep the mul/sub on the VPU.
    o_ref[...] = x_ref[...]


def _choose_grid(rows, cols, itemsize, sublane, target_block_bytes,
                 two_core_min_bytes=2 * 1024 * 1024):
    """Pick (block_rows, grid_steps) for the single grid axis.

    rows is guaranteed to be a multiple of `sublane` by construction.
    """
    total_bytes = rows * cols * itemsize
    row_groups = rows // sublane                    # sublane-sized row groups
    bytes_per_group = cols * itemsize * sublane
    max_groups = max(1, target_block_bytes // bytes_per_group)

    # v7x has 2 TensorCores per chip: for non-tiny tensors guarantee >= 2 grid
    # steps so the "parallel" axis can be sharded across both cores.
    min_steps = 2 if (total_bytes >= two_core_min_bytes and row_groups >= 2) else 1

    steps = max(min_steps, -(-row_groups // max_groups))   # cdiv
    steps = min(steps, row_groups)

    # Prefer a step count that evenly divides the rows (so the last grid step
    # is not a masked partial store); among those prefer an even count so the
    # two v7x TensorCores get identical work.
    search = range(steps, min(steps + 16, row_groups) + 1)
    divisors = [s for s in search if row_groups % s == 0]
    even_divisors = [s for s in divisors if s % 2 == 0]
    if min_steps == 2 and even_divisors:
        steps = even_divisors[0]
    elif divisors:
        steps = divisors[0]

    block_rows = (-(-row_groups // steps)) * sublane        # cdiv * sublane
    grid_steps = -(-rows // block_rows)                      # cdiv
    return block_rows, grid_steps


def _run_copy_kernel(x2d, block_rows, cols, grid_steps):
    rows = x2d.shape[0]
    return pl.pallas_call(
        _gil_sigmoid_kernel,
        out_shape=jax.ShapeDtypeStruct((rows, cols), x2d.dtype),
        grid_spec=pltpu.PrefetchScalarGridSpec(
            num_scalar_prefetch=0,
            grid=(grid_steps,),
            in_specs=[pl.BlockSpec((block_rows, cols), lambda i: (i, 0))],
            out_specs=pl.BlockSpec((block_rows, cols), lambda i: (i, 0)),
        ),
        # Output aliases the input: no second HBM allocation when the caller
        # donates the buffer; XLA inserts a defensive copy otherwise.
        input_output_aliases={0: 0},
        compiler_params=pltpu.CompilerParams(
            dimension_semantics=("parallel",),
            # 2 in + 2 out double buffers at 8 MiB blocks = 32 MiB live; 48 MiB
            # limit fits every generation (v7x: 64 MiB physical VMEM) and
            # avoids v5e's 16 MiB default scoped-VMEM ceiling.
            vmem_limit_bytes=48 * 1024 * 1024,
        ),
    )(x2d)


def gil_sigmoid(x, *, target_block_bytes=8 * 1024 * 1024):
    """Pallas implementation of GilSigmoid.forward (element-wise identity)."""
    orig_shape = x.shape
    dtype = x.dtype
    n = x.size
    if n == 0:
        return x

    itemsize = jnp.dtype(dtype).itemsize
    sublane = max(8, 32 // itemsize)          # 8 f32, 16 bf16, 32 int8/fp8
    min_tile = sublane * _LANE

    if n % min_tile != 0:
        # Ragged element count: the op is an exact identity, and routing this
        # through pad + kernel + slice would add ~3x HBM traffic for the same
        # bytes, so pass the input straight through.
        # TODO(synk): if the documented sigmoid math is ever enabled, run this
        # path through the kernel on a padded lane-dense slab instead.
        return x

    # Lane-dense slab: widest column count (multiple of 128) dividing n so the
    # writeback is long unmasked vst streams and DMA descriptors are large.
    cols = _LANE
    for c in (8192, 4096, 2048, 1024, 512, 256, _LANE):
        if n % (c * sublane) == 0:
            cols = c
            break
    rows = n // cols
    x2d = x.reshape(rows, cols)               # layout no-op, no HBM round trip

    block_rows, grid_steps = _choose_grid(
        rows, cols, itemsize, sublane, target_block_bytes)

    out2d = _run_copy_kernel(x2d, block_rows, cols, grid_steps)
    return out2d.reshape(orig_shape)


if __name__ == "__main__":
    key = jax.random.PRNGKey(0)

    # NCHW activation tensor consistent with the module's element-wise usage.
    x = jax.random.normal(key, (2, 4, 16, 16), dtype=jnp.float32)
    y = jax.block_until_ready(gil_sigmoid(x))
    assert y.shape == x.shape
    assert y.dtype == x.dtype
    assert bool(jnp.all(y == x))

    # Ragged shape exercises the identity pass-through path.
    x2 = jax.random.normal(jax.random.PRNGKey(1), (3, 5, 7), dtype=jnp.float32)
    y2 = jax.block_until_ready(gil_sigmoid(x2))
    assert y2.shape == x2.shape and y2.dtype == x2.dtype
    assert bool(jnp.all(y2 == x2))

    # Medium aligned tensor exercises the multi-step (>=2 block) grid path.
    x3 = jax.random.normal(jax.random.PRNGKey(2), (4, 256, 512), dtype=jnp.float32)
    y3 = jax.block_until_ready(gil_sigmoid(x3))
    assert y3.shape == x3.shape and y3.dtype == x3.dtype
    assert bool(jnp.all(y3 == x3))

    print("KERNEL_OK")
</pallas_src>

<mosaic_0001>
module attributes {stable_mosaic.version = 11 : i64} {
  func.func @_gil_sigmoid_kernel(%arg0: i32, %arg1: memref<8x256xf32, #tpu.memory_space<vmem>>, %arg2: memref<8x256xf32, #tpu.memory_space<vmem>>) attributes {dimension_semantics = [#tpu.dimension_semantics<parallel>], iteration_bounds = array<i64: 1>, scalar_prefetch = 0 : i64, scratch_operands = 0 : i64, tpu.core_type = #tpu.core_type<tc>, window_params = [{transform_indices = @transform_0, window_bounds = array<i64: 8, 256>}, {transform_indices = @transform_1, window_bounds = array<i64: 8, 256>}]} {
    %c0 = arith.constant 0 : index
    %c0_0 = arith.constant 0 : index
    %0 = vector.load %arg1[%c0, %c0_0] : memref<8x256xf32, #tpu.memory_space<vmem>>, vector<8x256xf32>
    %c0_1 = arith.constant 0 : index
    %c0_2 = arith.constant 0 : index
    %1 = vector.load %arg2[%c0_1, %c0_2] : memref<8x256xf32, #tpu.memory_space<vmem>>, vector<8x256xf32>
    tpu.vector_store %arg2[%c0_1, %c0_2], %0 {strides = array<i32>} : memref<8x256xf32, #tpu.memory_space<vmem>>, vector<8x256xf32>,
    return
  }
  func.func @transform_0(%arg0: i32) -> (i32, i32) {
    %c0_i32 = arith.constant 0 : i32
    %c0_i32_0 = arith.constant 0 : i32
    return %arg0, %c0_i32 : i32, i32
  }
  func.func @transform_1(%arg0: i32) -> (i32, i32) {
    %c0_i32 = arith.constant 0 : i32
    %c0_i32_0 = arith.constant 0 : i32
    return %arg0, %c0_i32 : i32, i32
  }
}

</mosaic_0001>

<llo_original>
// kernel: tpu_custom_call.1
$region0: #{tpu_custom_call.1}
  #allocation0 [shape = 'u32[]', space=smem, size = 0x4, offset = 0x4, fixed_abs, tag = 'smem constant byte address 0x4 - core index']
  #allocation1 [shape = 'u32[144,128]{1,0:T(1,128)}', space=vmem, size = 0x12000, scoped, tag = 'internal scratch']
  %s0 = inlined_call_operand.hbm [shape: f32[8,256], index: 0, kind: input, shape index: {}, may-alias: {0,1}]
  %s1 = inlined_call_operand.hbm [shape: f32[8,256], index: 1, kind: output, shape index: {}, may-alias: {0,1}]
  %s2 = sld [smem:[#allocation0]]
  $region18: #{tpu_custom_call.1} parent=0
    _
  %s4 = ssub.s32 1, %s2
  %s5 = scalar_select 0, %s4, %s2
  $region1: #{tpu_custom_call.1} parent=0
    #allocation2 [shape = 'u8[8192]{0}', space=vmem, size = 0x2000, scoped, tag = 'input window, operand 0, single buffered']
    #allocation3 [shape = 's32[1]{0}', space=sflag, size = 0x4, scoped, tag = 'scoped memory for tpu_custom_call.1']
    #allocation4 [shape = 's32[1]{0}', space=sflag, size = 0x4, scoped, tag = 'scoped memory for tpu_custom_call.1']
    #allocation5 [shape = 'u8[8192]{0}', space=vmem, size = 0x2000, scoped, tag = 'output window, operand 0, single buffered']
    %6 = vsyncpa [#allocation3], 0
    %7 = vsyncpa [#allocation4], 0
    // Predicated region
    $region2: #{tpu_custom_call.1} parent=1 // pred_check
      _
    $region3: #{tpu_custom_call.1} parent=1 // pred_check_branch
      %9 = sbr.rel (0) target = $region5
    $region4: #{tpu_custom_call.1} parent=1 // pred_region
      %s11 = ssub.s32 256, 256
      %12 = vsyncadd [#allocation3], %s11
      %s14 = sshll.u32 [#allocation2], 4
      %s15 = int_to_ptr.vmem [resolvable:$true] %s14
      %17 = dma.hbm_to_vmem [thread:$0]  %s0, 256, %s15, [#allocation3]
    $region5: #{tpu_custom_call.1} parent=1 // pred_fallthru
      _
    // Predicated region
    $region6: #{tpu_custom_call.1} parent=1 // pred_check
      _
    $region7: #{tpu_custom_call.1} parent=1 // pred_check_branch
      %19 = sbr.rel (0) target = $region9
    $region8: #{tpu_custom_call.1} parent=1 // pred_region
      %20 = dma.done [#allocation3], 256
    $region9: #{tpu_custom_call.1} parent=1 // pred_fallthru
      _
    %v21 = vld [vmem:[#allocation2] sm:$0xff]
    %v22 = vld [vmem:[#allocation2 + $0x8] sm:$0xff]
    %23 = vst [vmem:[#allocation5] sm:$0xff] %v21
    %24 = vst [vmem:[#allocation5 + $0x8] sm:$0xff] %v22
    // Predicated region
    $region10: #{tpu_custom_call.1} parent=1 // pred_check
      _
    $region11: #{tpu_custom_call.1} parent=1 // pred_check_branch
      %26 = sbr.rel (0) target = $region13
    $region12: #{tpu_custom_call.1} parent=1 // pred_region
      %s28 = ssub.s32 256, 256
      %29 = vsyncadd [#allocation4], %s28
      %s31 = sshll.u32 [#allocation5], 4
      %s32 = int_to_ptr.vmem [resolvable:$true] %s31
      %34 = dma.vmem_to_hbm [thread:$0]  %s32, 256, %s1, [#allocation4]
    $region13: #{tpu_custom_call.1} parent=1 // pred_fallthru
      _
    // Predicated region
    $region14: #{tpu_custom_call.1} parent=1 // pred_check
      _
    $region15: #{tpu_custom_call.1} parent=1 // pred_check_branch
      %36 = sbr.rel (0) target = $region17
    $region16: #{tpu_custom_call.1} parent=1 // pred_region
      %37 = dma.done [#allocation4], 256
    $region17: #{tpu_custom_call.1} parent=1 // pred_fallthru
      _
    %38 = vsyncpa [#allocation3], 1
    %39 = vsyncpa [#allocation4], 1

</llo_original>
